<compile_context>
chip_gen: v5e
topology: v5e:2x2
jax: 0.10.0
libtpu: 0.0.40
codegen_flags: <defaults>
</compile_context>

<pallas_src>
import jax
import jax.numpy as jnp
from jax.experimental import pallas as pl
from jax.experimental.pallas import tpu as pltpu


def _round_up(x, m):
    return (x + m - 1) // m * m


def _choose_tiles(B, S, H, h_itemsize, target_bytes):
    """Pick (Bt, B_pad, TH, TS, S_pad).

    Block legality honoured for every BlockSpec:
      * mask block (Bt, TS):      Bt == B_pad or Bt % 8 == 0;  TS % 128 == 0
      * out  block (Bt, TH):      same Bt rule;  TH == H or TH % 128 == 0
      * h    block (Bt, TS, TH):  TS % 128 == 0 covers every dtype's sublane
                                  multiple; TH as above.
    """
    # Batch rows per grid step.
    if B <= 8:
        Bt = B          # full-batch block (== full dim, always legal)
    else:
        Bt = 8          # multiple of 8, legal as a partial block
    B_pad = _round_up(B, Bt)

    # Hidden block: full H unless we can (and should) split it.
    TH = H
    if H % 128 == 0:
        # Shrink so one (Bt, 128, TH) slab fits the byte target; halving keeps
        # TH a divisor of H, and the % 256 guard keeps it a multiple of 128.
        while TH % 256 == 0 and Bt * 128 * TH * h_itemsize > target_bytes:
            TH //= 2
        # v7x shards "parallel" grid axes over its 2 TensorCores: if the batch
        # axis has a single block, split H once so both cores get work.
        if B_pad // Bt < 2 and H // TH < 2 and TH % 256 == 0:
            TH //= 2

    # Sequence tile: multiple of 128, sized so one h tile is ~target_bytes.
    ts_cap = target_bytes // max(1, Bt * TH * h_itemsize)
    ts_cap = max(128, (ts_cap // 128) * 128)
    TS = min(_round_up(S, 128), ts_cap)
    S_pad = _round_up(S, TS)
    return Bt, B_pad, TH, TS, S_pad


def mean_pool_kernel(h_ref, m_ref, o_ref, msum_ref):
    # h_ref: (Bt, TS, TH) native dtype     m_ref: (Bt, TS) f32
    # o_ref: (Bt, TH) f32 resident accumulator   msum_ref: (Bt, 1) f32 scratch
    s = pl.program_id(2)

    @pl.when(s == 0)
    def _init():
        o_ref[...] = jnp.zeros_like(o_ref)
        msum_ref[...] = jnp.zeros_like(msum_ref)

    m = m_ref[...]                                             # (Bt, TS) f32
    # Multiply in the hidden-state's native dtype (mask is exactly 0/1, so the
    # product is bit-exact); accumulate the reduction in f32.
    prod = h_ref[...] * m.astype(h_ref.dtype)[:, :, None]      # (Bt, TS, TH)
    o_ref[...] += jnp.sum(prod, axis=1, dtype=jnp.float32)     # (Bt, TH)
    msum_ref[...] += jnp.sum(m, axis=1, keepdims=True)         # (Bt, 1)

    @pl.when(s == pl.num_programs(2) - 1)
    def _finalize():
        denom = jnp.maximum(msum_ref[...], 1e-9)   # torch.clamp(min=1e-9)
        inv = pl.reciprocal(denom, approx=False)   # exact; only (Bt, 1) values
        o_ref[...] = o_ref[...] * inv


def mean_pooling(last_hidden_state, attention_mask, *, target_bytes=8 << 20,
                 block_s=None):
    """last_hidden_state: [B, S, H]; attention_mask: [B, S] -> [B, H] float32."""
    B, S, H = last_hidden_state.shape
    h_itemsize = jnp.dtype(last_hidden_state.dtype).itemsize
    Bt, B_pad, TH, TS, S_pad = _choose_tiles(B, S, H, h_itemsize, target_bytes)
    if block_s is not None:
        TS = max(128, _round_up(block_s, 128))   # keep the block legal
        S_pad = _round_up(S, TS)

    # Lane-dense 2D f32 mask (tiny next to the hidden-state stream).
    h = last_hidden_state
    m = attention_mask.astype(jnp.float32)
    if (B_pad, S_pad) != (B, S):
        # Zero-mask padding contributes nothing to numerator or denominator.
        h = jnp.pad(h, ((0, B_pad - B), (0, S_pad - S), (0, 0)))
        m = jnp.pad(m, ((0, B_pad - B), (0, S_pad - S)))

    grid = (B_pad // Bt, H // TH, S_pad // TS)

    out = pl.pallas_call(
        mean_pool_kernel,
        out_shape=jax.ShapeDtypeStruct((B_pad, H), jnp.float32),
        grid_spec=pltpu.PrefetchScalarGridSpec(
            num_scalar_prefetch=0,
            grid=grid,
            in_specs=[
                pl.BlockSpec((Bt, TS, TH), lambda b, hb, s: (b, s, hb)),
                pl.BlockSpec((Bt, TS), lambda b, hb, s: (b, s)),
            ],
            # Output tile resident across the (last, "arbitrary") seq axis.
            out_specs=pl.BlockSpec((Bt, TH), lambda b, hb, s: (b, hb)),
            scratch_shapes=[
                pltpu.VMEM((Bt, 1), jnp.float32),   # running mask count
            ],
        ),
        compiler_params=pltpu.CompilerParams(
            dimension_semantics=("parallel", "parallel", "arbitrary"),
            vmem_limit_bytes=48 * 1024 * 1024,  # headroom below v7x's 64 MiB
        ),
    )(h, m)

    return out[:B]


def mean_pooling_ref(last_hidden_state, attention_mask):
    m = attention_mask.astype(jnp.float32)[..., None]
    s = jnp.sum(last_hidden_state.astype(jnp.float32) * m, axis=1)
    d = jnp.maximum(jnp.sum(m, axis=1), 1e-9)
    return s / d


if __name__ == "__main__":
    key = jax.random.PRNGKey(0)
    k1, k2, k3, k4, k5, k6 = jax.random.split(key, 6)

    # Test 1: module-scale shapes (batch=2, seq=8, hidden=32), f32.
    B, S, H = 2, 8, 32
    h1 = jax.random.normal(k1, (B, S, H), dtype=jnp.float32)
    m1 = jax.random.bernoulli(k2, p=0.7, shape=(B, S)).astype(jnp.int32)
    out1 = mean_pooling(h1, m1)
    jax.block_until_ready(out1)
    ref1 = mean_pooling_ref(h1, m1)
    assert out1.shape == (B, H)
    assert jnp.allclose(out1, ref1, atol=1e-5, rtol=1e-5), "mismatch (f32)"

    # Test 2: bf16 hidden states, uneven S (padding), a multi-step seq
    # reduction (resident accumulator), the split-H parallel axis, and an
    # all-zero mask row (exercises the 1e-9 clamp).
    B2, S2, H2 = 3, 300, 256
    h2 = jax.random.normal(k3, (B2, S2, H2), dtype=jnp.bfloat16)
    m2 = jax.random.bernoulli(k4, p=0.6, shape=(B2, S2)).astype(jnp.int32)
    m2 = m2.at[1, :].set(0)
    out2 = mean_pooling(h2, m2, block_s=128)   # 3 seq steps, 2 H blocks
    jax.block_until_ready(out2)
    ref2 = mean_pooling_ref(h2, m2)
    assert out2.shape == (B2, H2)
    assert jnp.allclose(out2, ref2, atol=1e-3, rtol=1e-3), "mismatch (bf16)"

    # Test 3: batch > 8 (Bt = 8 blocking path with zero-padded batch rows).
    B3, S3, H3 = 10, 40, 32
    h3 = jax.random.normal(k5, (B3, S3, H3), dtype=jnp.float32)
    m3 = jax.random.bernoulli(k6, p=0.5, shape=(B3, S3)).astype(jnp.int32)
    out3 = mean_pooling(h3, m3)
    jax.block_until_ready(out3)
    ref3 = mean_pooling_ref(h3, m3)
    assert out3.shape == (B3, H3)
    assert jnp.allclose(out3, ref3, atol=1e-5, rtol=1e-5), "mismatch (batched)"

    print("KERNEL_OK")
</pallas_src>

<mosaic_0001>
module attributes {stable_mosaic.version = 11 : i64} {
  func.func @mean_pool_kernel(%arg0: i32, %arg1: i32, %arg2: i32, %arg3: memref<2x128x32xf32, #tpu.memory_space<vmem>>, %arg4: memref<2x128xf32, #tpu.memory_space<vmem>>, %arg5: memref<2x32xf32, #tpu.memory_space<vmem>>, %arg6: memref<2x1xf32, #tpu.memory_space<vmem>>) attributes {dimension_semantics = [#tpu.dimension_semantics<parallel>, #tpu.dimension_semantics<parallel>, #tpu.dimension_semantics<arbitrary>], iteration_bounds = array<i64: 1, 1, 1>, scalar_prefetch = 0 : i64, scratch_operands = 1 : i64, tpu.core_type = #tpu.core_type<tc>, window_params = [{transform_indices = @transform_0, window_bounds = array<i64: 2, 128, 32>}, {transform_indices = @transform_1, window_bounds = array<i64: 2, 128>}, {transform_indices = @transform_2, window_bounds = array<i64: 2, 32>}]} {
    %c0_i32 = arith.constant 0 : i32
    %0 = arith.cmpi eq, %arg2, %c0_i32 : i32
    %1 = arith.extui %0 : i1 to i32
    %c0_i32_0 = arith.constant 0 : i32
    %2 = arith.cmpi ne, %1, %c0_i32_0 : i32
    scf.if %2 {
      %cst_16 = arith.constant 0.000000e+00 : f32
      %20 = vector.broadcast %cst_16 : f32 to vector<2x32xf32>
      %c0_17 = arith.constant 0 : index
      %c0_18 = arith.constant 0 : index
      %21 = vector.load %arg5[%c0_17, %c0_18] : memref<2x32xf32, #tpu.memory_space<vmem>>, vector<2x32xf32>
      tpu.vector_store %arg5[%c0_17, %c0_18], %20 {strides = array<i32>} : memref<2x32xf32, #tpu.memory_space<vmem>>, vector<2x32xf32>,
      %cst_19 = arith.constant 0.000000e+00 : f32
      %22 = vector.broadcast %cst_19 : f32 to vector<2x1xf32>
      %c0_20 = arith.constant 0 : index
      %c0_21 = arith.constant 0 : index
      %23 = vector.load %arg6[%c0_20, %c0_21] : memref<2x1xf32, #tpu.memory_space<vmem>>, vector<2x1xf32>
      tpu.vector_store %arg6[%c0_20, %c0_21], %22 {strides = array<i32>} : memref<2x1xf32, #tpu.memory_space<vmem>>, vector<2x1xf32>,
    } else {
    }
    %c0 = arith.constant 0 : index
    %c0_1 = arith.constant 0 : index
    %3 = vector.load %arg4[%c0, %c0_1] : memref<2x128xf32, #tpu.memory_space<vmem>>, vector<2x128xf32>
    %c0_2 = arith.constant 0 : index
    %c0_3 = arith.constant 0 : index
    %c0_4 = arith.constant 0 : index
    %4 = vector.load %arg3[%c0_2, %c0_3, %c0_4] : memref<2x128x32xf32, #tpu.memory_space<vmem>>, vector<2x128x32xf32>
    %5 = vector.shape_cast %3 : vector<2x128xf32> to vector<2x128x1xf32>
    %6 = vector.broadcast %5 : vector<2x128x1xf32> to vector<2x128x32xf32>
    %7 = arith.mulf %4, %6 : vector<2x128x32xf32>
    %c0_5 = arith.constant 0 : index
    %c0_6 = arith.constant 0 : index
    %8 = vector.load %arg5[%c0_5, %c0_6] : memref<2x32xf32, #tpu.memory_space<vmem>>, vector<2x32xf32>
    %cst = arith.constant dense<0.000000e+00> : vector<2x32xf32>
    %9 = vector.multi_reduction <add>, %7, %cst [1] : vector<2x128x32xf32> to vector<2x32xf32>
    %10 = arith.addf %8, %9 : vector<2x32xf32>
    %c0_7 = arith.constant 0 : index
    %c0_8 = arith.constant 0 : index
    %11 = vector.load %arg5[%c0_7, %c0_8] : memref<2x32xf32, #tpu.memory_space<vmem>>, vector<2x32xf32>
    tpu.vector_store %arg5[%c0_7, %c0_8], %10 {strides = array<i32>} : memref<2x32xf32, #tpu.memory_space<vmem>>, vector<2x32xf32>,
    %c0_9 = arith.constant 0 : index
    %c0_10 = arith.constant 0 : index
    %12 = vector.load %arg6[%c0_9, %c0_10] : memref<2x1xf32, #tpu.memory_space<vmem>>, vector<2x1xf32>
    %cst_11 = arith.constant dense<0.000000e+00> : vector<2xf32>
    %13 = vector.multi_reduction <add>, %3, %cst_11 [1] : vector<2x128xf32> to vector<2xf32>
    %14 = vector.shape_cast %13 : vector<2xf32> to vector<2x1xf32>
    %15 = arith.addf %12, %14 : vector<2x1xf32>
    %c0_12 = arith.constant 0 : index
    %c0_13 = arith.constant 0 : index
    %16 = vector.load %arg6[%c0_12, %c0_13] : memref<2x1xf32, #tpu.memory_space<vmem>>, vector<2x1xf32>
    tpu.vector_store %arg6[%c0_12, %c0_13], %15 {strides = array<i32>} : memref<2x1xf32, #tpu.memory_space<vmem>>, vector<2x1xf32>,
    %c0_i32_14 = arith.constant 0 : i32
    %17 = arith.cmpi eq, %arg2, %c0_i32_14 : i32
    %18 = arith.extui %17 : i1 to i32
    %c0_i32_15 = arith.constant 0 : i32
    %19 = arith.cmpi ne, %18, %c0_i32_15 : i32
    scf.if %19 {
      %c0_16 = arith.constant 0 : index
      %c0_17 = arith.constant 0 : index
      %20 = vector.load %arg6[%c0_16, %c0_17] : memref<2x1xf32, #tpu.memory_space<vmem>>, vector<2x1xf32>
      %cst_18 = arith.constant 9.99999971E-10 : f32
      %21 = vector.broadcast %cst_18 : f32 to vector<2x1xf32>
      %22 = arith.maximumf %20, %21 : vector<2x1xf32>
      %23 = tpu.reciprocal %22 : vector<2x1xf32> -> vector<2x1xf32>
      %c0_19 = arith.constant 0 : index
      %c0_20 = arith.constant 0 : index
      %24 = vector.load %arg5[%c0_19, %c0_20] : memref<2x32xf32, #tpu.memory_space<vmem>>, vector<2x32xf32>
      %25 = vector.broadcast %23 : vector<2x1xf32> to vector<2x32xf32>
      %26 = arith.mulf %24, %25 : vector<2x32xf32>
      %c0_21 = arith.constant 0 : index
      %c0_22 = arith.constant 0 : index
      %27 = vector.load %arg5[%c0_21, %c0_22] : memref<2x32xf32, #tpu.memory_space<vmem>>, vector<2x32xf32>
      tpu.vector_store %arg5[%c0_21, %c0_22], %26 {strides = array<i32>} : memref<2x32xf32, #tpu.memory_space<vmem>>, vector<2x32xf32>,
    } else {
    }
    return
  }
  func.func @transform_0(%arg0: i32, %arg1: i32, %arg2: i32) -> (i32, i32, i32) {
    %c0_i32 = arith.constant 0 : i32
    return %arg0, %arg2, %arg1 : i32, i32, i32
  }
  func.func @transform_1(%arg0: i32, %arg1: i32, %arg2: i32) -> (i32, i32) {
    %c0_i32 = arith.constant 0 : i32
    return %arg0, %arg2 : i32, i32
  }
  func.func @transform_2(%arg0: i32, %arg1: i32, %arg2: i32) -> (i32, i32) {
    %c0_i32 = arith.constant 0 : i32
    return %arg0, %arg1 : i32, i32
  }
}

</mosaic_0001>

<llo_original>
// kernel: tpu_custom_call.1
$region0: #{tpu_custom_call.1}
  #allocation0 [shape = 'u32[]', space=smem, size = 0x4, offset = 0x4, fixed_abs, tag = 'smem constant byte address 0x4 - core index']
  #allocation1 [shape = 'u32[72,128]{1,0:T(1,128)}', space=vmem, size = 0x9000, scoped, tag = 'internal scratch']
  #allocation2 [shape = 'f32[2,1]{1,0:T(2,128)}', space=vmem, size = 0x400, scoped, tag = 'scratch operand']
  %s0 = inlined_call_operand.vmem [shape: f32[2,128,32], index: 0, kind: input, shape index: {}]
  %s1 = inlined_call_operand.vmem [shape: f32[2,128], index: 1, kind: input, shape index: {}]
  %s2 = inlined_call_operand.hbm [shape: f32[2,32], index: 2, kind: output, shape index: {}]
  %s3 = sld [smem:[#allocation0]]
  $region26: #{tpu_custom_call.1} parent=0
    _
  %s5 = ssub.s32 1, %s3
  %s6 = scalar_select 0, %s5, %s3
  $region1: #{tpu_custom_call.1} parent=0
    #allocation3 [shape = 'u8[1024]{0}', space=vmem, size = 0x400, scoped, tag = 'output window, operand 0, single buffered']
    #allocation4 [shape = 's32[1]{0}', space=sflag, size = 0x4, scoped, tag = 'scoped memory for tpu_custom_call.1']
    %7 = vsyncpa [#allocation4], 0
    // Predicated region
    $region2: #{tpu_custom_call.1} parent=1 // pred_check
      _
    $region3: #{tpu_custom_call.1} parent=1 // pred_check_branch
      %9 = sbr.rel (0) target = $region5
    $region4: #{tpu_custom_call.1} parent=1 // pred_region
      _
    $region5: #{tpu_custom_call.1} parent=1 // pred_fallthru
      _
    // Predicated region
    $region6: #{tpu_custom_call.1} parent=1 // pred_check
      _
    $region7: #{tpu_custom_call.1} parent=1 // pred_check_branch
      %11 = sbr.rel (0) target = $region9
    $region8: #{tpu_custom_call.1} parent=1 // pred_region
      _
    $region9: #{tpu_custom_call.1} parent=1 // pred_fallthru
      _
    %p12 = scmp.eq.s32.totalorder 0, 0
    // Predicated region
    $region10: #{tpu_custom_call.1} parent=1 // pred_check
      %p13 = pneg %p12
    $region11: #{tpu_custom_call.1} parent=1 // pred_check_branch
      %15 = sbr.rel (%p13) target = $region13
    $region12: #{tpu_custom_call.1} parent=1 // pred_region
      %vm16 = vcmask 254976
      %17 = vst.msk [vmem:[#allocation3] sm:$0x3] %vm16, 0.0
      %vm18 = vcmask 1024
      %19 = vst.msk [vmem:[#allocation2] sm:$0x3] %vm18, 0.0
    $region13: #{tpu_custom_call.1} parent=1 // pred_fallthru
      _
    %v20 = vld [vmem:[%s1] sm:$0x3]
    %v21 = vld [vmem:[%s0] sm:$0xff]
    %v22 = vld [vmem:[%s0 + $0x8] sm:$0xff]
    %v23 = vld [vmem:[%s0 + $0x10] sm:$0xff]
    %v24 = vld [vmem:[%s0 + $0x18] sm:$0xff]
    %v25 = vld [vmem:[%s0 + $0x20] sm:$0xff]
    %v26 = vld [vmem:[%s0 + $0x28] sm:$0xff]
    %v27 = vld [vmem:[%s0 + $0x30] sm:$0xff]
    %v28 = vld [vmem:[%s0 + $0x38] sm:$0xff]
    %v29 = vld [vmem:[%s0 + $0x40] sm:$0xff]
    %v30 = vld [vmem:[%s0 + $0x48] sm:$0xff]
    %v31 = vld [vmem:[%s0 + $0x50] sm:$0xff]
    %v32 = vld [vmem:[%s0 + $0x58] sm:$0xff]
    %v33 = vld [vmem:[%s0 + $0x60] sm:$0xff]
    %v34 = vld [vmem:[%s0 + $0x68] sm:$0xff]
    %v35 = vld [vmem:[%s0 + $0x70] sm:$0xff]
    %v36 = vld [vmem:[%s0 + $0x78] sm:$0xff]
    %v37 = vld [vmem:[%s0 + $0x80] sm:$0xff]
    %v38 = vld [vmem:[%s0 + $0x88] sm:$0xff]
    %v39 = vld [vmem:[%s0 + $0x90] sm:$0xff]
    %v40 = vld [vmem:[%s0 + $0x98] sm:$0xff]
    %v41 = vld [vmem:[%s0 + $0xa0] sm:$0xff]
    %v42 = vld [vmem:[%s0 + $0xa8] sm:$0xff]
    %v43 = vld [vmem:[%s0 + $0xb0] sm:$0xff]
    %v44 = vld [vmem:[%s0 + $0xb8] sm:$0xff]
    %v45 = vld [vmem:[%s0 + $0xc0] sm:$0xff]
    %v46 = vld [vmem:[%s0 + $0xc8] sm:$0xff]
    %v47 = vld [vmem:[%s0 + $0xd0] sm:$0xff]
    %v48 = vld [vmem:[%s0 + $0xd8] sm:$0xff]
    %v49 = vld [vmem:[%s0 + $0xe0] sm:$0xff]
    %v50 = vld [vmem:[%s0 + $0xe8] sm:$0xff]
    %v51 = vld [vmem:[%s0 + $0xf0] sm:$0xff]
    %v52 = vld [vmem:[%s0 + $0xf8] sm:$0xff]
    %v53 = vperm.slane %v20, 0
    %v54 = vlaneseq
    %v55 = vshrl.u32 %v54, 7
    %57 = vset.pattern.permute.xlu0 %v55
    %58 = vperm.xlu0 %57, %v53
    %v59 = vpop.permute.xlu0 %58
    %v60 = vlaneseq
    %v61 = vshrl.u32 %v60, 7
    %v62 = vadd.s32 %v61, 8
    %63 = vset.pattern.permute.xlu0 %v62
    %64 = vperm.xlu0 %63, %v53
    %v65 = vpop.permute.xlu0 %64
    %v66 = vlaneseq
    %v67 = vshrl.u32 %v66, 7
    %v68 = vadd.s32 %v67, 16
    %69 = vset.pattern.permute.xlu0 %v68
    %70 = vperm.xlu0 %69, %v53
    %v71 = vpop.permute.xlu0 %70
    %v72 = vlaneseq
    %v73 = vshrl.u32 %v72, 7
    %v74 = vadd.s32 %v73, 24
    %75 = vset.pattern.permute.xlu0 %v74
    %76 = vperm.xlu0 %75, %v53
    %v77 = vpop.permute.xlu0 %76
    %v78 = vlaneseq
    %v79 = vshrl.u32 %v78, 7
    %v80 = vadd.s32 %v79, 32
    %81 = vset.pattern.permute.xlu0 %v80
    %82 = vperm.xlu0 %81, %v53
    %v83 = vpop.permute.xlu0 %82
    %v84 = vlaneseq
    %v85 = vshrl.u32 %v84, 7
    %v86 = vadd.s32 %v85, 40
    %87 = vset.pattern.permute.xlu0 %v86
    %88 = vperm.xlu0 %87, %v53
    %v89 = vpop.permute.xlu0 %88
    %v90 = vlaneseq
    %v91 = vshrl.u32 %v90, 7
    %v92 = vadd.s32 %v91, 48
    %93 = vset.pattern.permute.xlu0 %v92
    %94 = vperm.xlu0 %93, %v53
    %v95 = vpop.permute.xlu0 %94
    %v96 = vlaneseq
    %v97 = vshrl.u32 %v96, 7
    %v98 = vadd.s32 %v97, 56
    %99 = vset.pattern.permute.xlu0 %v98
    %100 = vperm.xlu0 %99, %v53
    %v101 = vpop.permute.xlu0 %100
    %v102 = vlaneseq
    %v103 = vshrl.u32 %v102, 7
    %v104 = vadd.s32 %v103, 64
    %105 = vset.pattern.permute.xlu0 %v104
    %106 = vperm.xlu0 %105, %v53
    %v107 = vpop.permute.xlu0 %106
    %v108 = vlaneseq
    %v109 = vshrl.u32 %v108, 7
    %v110 = vadd.s32 %v109, 72
    %111 = vset.pattern.permute.xlu0 %v110
    %112 = vperm.xlu0 %111, %v53
    %v113 = vpop.permute.xlu0 %112
    %v114 = vlaneseq
    %v115 = vshrl.u32 %v114, 7
    %v116 = vadd.s32 %v115, 80
    %117 = vset.pattern.permute.xlu0 %v116
    %118 = vperm.xlu0 %117, %v53
    %v119 = vpop.permute.xlu0 %118
    %v120 = vlaneseq
    %v121 = vshrl.u32 %v120, 7
    %v122 = vadd.s32 %v121, 88
    %123 = vset.pattern.permute.xlu0 %v122
    %124 = vperm.xlu0 %123, %v53
    %v125 = vpop.permute.xlu0 %124
    %v126 = vlaneseq
    %v127 = vshrl.u32 %v126, 7
    %v128 = vadd.s32 %v127, 96
    %129 = vset.pattern.permute.xlu0 %v128
    %130 = vperm.xlu0 %129, %v53
    %v131 = vpop.permute.xlu0 %130
    %v132 = vlaneseq
    %v133 = vshrl.u32 %v132, 7
    %v134 = vadd.s32 %v133, 104
    %135 = vset.pattern.permute.xlu0 %v134
    %136 = vperm.xlu0 %135, %v53
    %v137 = vpop.permute.xlu0 %136
    %v138 = vlaneseq
    %v139 = vshrl.u32 %v138, 7
    %v140 = vadd.s32 %v139, 112
    %141 = vset.pattern.permute.xlu0 %v140
    %142 = vperm.xlu0 %141, %v53
    %v143 = vpop.permute.xlu0 %142
    %v144 = vlaneseq
    %v145 = vshrl.u32 %v144, 7
    %v146 = vadd.s32 %v145, 120
    %147 = vset.pattern.permute.xlu0 %v146
    %148 = vperm.xlu0 %147, %v53
    %v149 = vpop.permute.xlu0 %148
    %v150 = vperm.slane %v20, 1
    %v151 = vlaneseq
    %v152 = vshrl.u32 %v151, 7
    %154 = vset.pattern.permute.xlu0 %v152
    %155 = vperm.xlu0 %154, %v150
    %v156 = vpop.permute.xlu0 %155
    %v157 = vlaneseq
    %v158 = vshrl.u32 %v157, 7
    %v159 = vadd.s32 %v158, 8
    %160 = vset.pattern.permute.xlu0 %v159
    %161 = vperm.xlu0 %160, %v150
    %v162 = vpop.permute.xlu0 %161
    %v163 = vlaneseq
    %v164 = vshrl.u32 %v163, 7
    %v165 = vadd.s32 %v164, 16
    %166 = vset.pattern.permute.xlu0 %v165
    %167 = vperm.xlu0 %166, %v150
    %v168 = vpop.permute.xlu0 %167
    %v169 = vlaneseq
    %v170 = vshrl.u32 %v169, 7
    %v171 = vadd.s32 %v170, 24
    %172 = vset.pattern.permute.xlu0 %v171
    %173 = vperm.xlu0 %172, %v150
    %v174 = vpop.permute.xlu0 %173
    %v175 = vlaneseq
    %v176 = vshrl.u32 %v175, 7
    %v177 = vadd.s32 %v176, 32
    %178 = vset.pattern.permute.xlu0 %v177
    %179 = vperm.xlu0 %178, %v150
    %v180 = vpop.permute.xlu0 %179
    %v181 = vlaneseq
    %v182 = vshrl.u32 %v181, 7
    %v183 = vadd.s32 %v182, 40
    %184 = vset.pattern.permute.xlu0 %v183
    %185 = vperm.xlu0 %184, %v150
    %v186 = vpop.permute.xlu0 %185
    %v187 = vlaneseq
    %v188 = vshrl.u32 %v187, 7
    %v189 = vadd.s32 %v188, 48
    %190 = vset.pattern.permute.xlu0 %v189
    %191 = vperm.xlu0 %190, %v150
    %v192 = vpop.permute.xlu0 %191
    %v193 = vlaneseq
    %v194 = vshrl.u32 %v193, 7
    %v195 = vadd.s32 %v194, 56
    %196 = vset.pattern.permute.xlu0 %v195
    %197 = vperm.xlu0 %196, %v150
    %v198 = vpop.permute.xlu0 %197
    %v199 = vlaneseq
    %v200 = vshrl.u32 %v199, 7
    %v201 = vadd.s32 %v200, 64
    %202 = vset.pattern.permute.xlu0 %v201
    %203 = vperm.xlu0 %202, %v150
    %v204 = vpop.permute.xlu0 %203
    %v205 = vlaneseq
    %v206 = vshrl.u32 %v205, 7
    %v207 = vadd.s32 %v206, 72
    %208 = vset.pattern.permute.xlu0 %v207
    %209 = vperm.xlu0 %208, %v150
    %v210 = vpop.permute.xlu0 %209
    %v211 = vlaneseq
    %v212 = vshrl.u32 %v211, 7
    %v213 = vadd.s32 %v212, 80
    %214 = vset.pattern.permute.xlu0 %v213
    %215 = vperm.xlu0 %214, %v150
    %v216 = vpop.permute.xlu0 %215
    %v217 = vlaneseq
    %v218 = vshrl.u32 %v217, 7
    %v219 = vadd.s32 %v218, 88
    %220 = vset.pattern.permute.xlu0 %v219
    %221 = vperm.xlu0 %220, %v150
    %v222 = vpop.permute.xlu0 %221
    %v223 = vlaneseq
    %v224 = vshrl.u32 %v223, 7
    %v225 = vadd.s32 %v224, 96
    %226 = vset.pattern.permute.xlu0 %v225
    %227 = vperm.xlu0 %226, %v150
    %v228 = vpop.permute.xlu0 %227
    %v229 = vlaneseq
    %v230 = vshrl.u32 %v229, 7
    %v231 = vadd.s32 %v230, 104
    %232 = vset.pattern.permute.xlu0 %v231
    %233 = vperm.xlu0 %232, %v150
    %v234 = vpop.permute.xlu0 %233
    %v235 = vlaneseq
    %v236 = vshrl.u32 %v235, 7
    %v237 = vadd.s32 %v236, 112
    %238 = vset.pattern.permute.xlu0 %v237
    %239 = vperm.xlu0 %238, %v150
    %v240 = vpop.permute.xlu0 %239
    %v241 = vlaneseq
    %v242 = vshrl.u32 %v241, 7
    %v243 = vadd.s32 %v242, 120
    %244 = vset.pattern.permute.xlu0 %v243
    %245 = vperm.xlu0 %244, %v150
    %v246 = vpop.permute.xlu0 %245
    %v247 = vmul.f32 %v21, %v59
    %v248 = vmul.f32 %v22, %v65
    %v249 = vmul.f32 %v23, %v71
    %v250 = vmul.f32 %v24, %v77
    %v251 = vmul.f32 %v25, %v83
    %v252 = vmul.f32 %v26, %v89
    %v253 = vmul.f32 %v27, %v95
    %v254 = vmul.f32 %v28, %v101
    %v255 = vmul.f32 %v29, %v107
    %v256 = vmul.f32 %v30, %v113
    %v257 = vmul.f32 %v31, %v119
    %v258 = vmul.f32 %v32, %v125
    %v259 = vmul.f32 %v33, %v131
    %v260 = vmul.f32 %v34, %v137
    %v261 = vmul.f32 %v35, %v143
    %v262 = vmul.f32 %v36, %v149
    %v263 = vmul.f32 %v37, %v156
    %v264 = vmul.f32 %v38, %v162
    %v265 = vmul.f32 %v39, %v168
    %v266 = vmul.f32 %v40, %v174
    %v267 = vmul.f32 %v41, %v180
    %v268 = vmul.f32 %v42, %v186
    %v269 = vmul.f32 %v43, %v192
    %v270 = vmul.f32 %v44, %v198
    %v271 = vmul.f32 %v45, %v204
    %v272 = vmul.f32 %v46, %v210
    %v273 = vmul.f32 %v47, %v216
    %v274 = vmul.f32 %v48, %v222
    %v275 = vmul.f32 %v49, %v228
    %v276 = vmul.f32 %v50, %v234
    %v277 = vmul.f32 %v51, %v240
    %v278 = vmul.f32 %v52, %v246
    %v279 = vld [vmem:[#allocation3] sm:$0x3]
    %vm280 = vcmask 261120
    %v281 = vsel %vm280, %v247, 0.0
    %v282 = vsel %vm280, %v248, 0.0
    %v283 = vadd.f32 %v281, %v282
    %v284 = vsel %vm280, %v249, 0.0
    %v285 = vadd.f32 %v283, %v284
    %v286 = vsel %vm280, %v250, 0.0
    %v287 = vadd.f32 %v285, %v286
    %v288 = vsel %vm280, %v251, 0.0
    %v289 = vadd.f32 %v287, %v288
    %v290 = vsel %vm280, %v252, 0.0
    %v291 = vadd.f32 %v289, %v290
    %v292 = vsel %vm280, %v253, 0.0
    %v293 = vadd.f32 %v291, %v292
    %v294 = vsel %vm280, %v254, 0.0
    %v295 = vadd.f32 %v293, %v294
    %v296 = vsel %vm280, %v255, 0.0
    %v297 = vadd.f32 %v295, %v296
    %v298 = vsel %vm280, %v256, 0.0
    %v299 = vadd.f32 %v297, %v298
    %v300 = vsel %vm280, %v257, 0.0
    %v301 = vadd.f32 %v299, %v300
    %v302 = vsel %vm280, %v258, 0.0
    %v303 = vadd.f32 %v301, %v302
    %v304 = vsel %vm280, %v259, 0.0
    %v305 = vadd.f32 %v303, %v304
    %v306 = vsel %vm280, %v260, 0.0
    %v307 = vadd.f32 %v305, %v306
    %v308 = vsel %vm280, %v261, 0.0
    %v309 = vadd.f32 %v307, %v308
    %v310 = vsel %vm280, %v262, 0.0
    %v311 = vadd.f32 %v309, %v310
    %v312 = vrot.slane %v311, 4
    %v313 = vadd.f32 %v311, %v312
    %v314 = vrot.slane %v313, 2
    %v315 = vadd.f32 %v313, %v314
    %v316 = vrot.slane %v315, 1
    %v317 = vadd.f32 %v315, %v316
    %v318 = vsel %vm280, %v263, 0.0
    %v319 = vsel %vm280, %v264, 0.0
    %v320 = vadd.f32 %v318, %v319
    %v321 = vsel %vm280, %v265, 0.0
    %v322 = vadd.f32 %v320, %v321
    %v323 = vsel %vm280, %v266, 0.0
    %v324 = vadd.f32 %v322, %v323
    %v325 = vsel %vm280, %v267, 0.0
    %v326 = vadd.f32 %v324, %v325
    %v327 = vsel %vm280, %v268, 0.0
    %v328 = vadd.f32 %v326, %v327
    %v329 = vsel %vm280, %v269, 0.0
    %v330 = vadd.f32 %v328, %v329
    %v331 = vsel %vm280, %v270, 0.0
    %v332 = vadd.f32 %v330, %v331
    %v333 = vsel %vm280, %v271, 0.0
    %v334 = vadd.f32 %v332, %v333
    %v335 = vsel %vm280, %v272, 0.0
    %v336 = vadd.f32 %v334, %v335
    %v337 = vsel %vm280, %v273, 0.0
    %v338 = vadd.f32 %v336, %v337
    %v339 = vsel %vm280, %v274, 0.0
    %v340 = vadd.f32 %v338, %v339
    %v341 = vsel %vm280, %v275, 0.0
    %v342 = vadd.f32 %v340, %v341
    %v343 = vsel %vm280, %v276, 0.0
    %v344 = vadd.f32 %v342, %v343
    %v345 = vsel %vm280, %v277, 0.0
    %v346 = vadd.f32 %v344, %v345
    %v347 = vsel %vm280, %v278, 0.0
    %v348 = vadd.f32 %v346, %v347
    %v349 = vrot.slane %v348, 4
    %v350 = vadd.f32 %v348, %v349
    %v351 = vrot.slane %v350, 2
    %v352 = vadd.f32 %v350, %v351
    %v353 = vrot.slane %v352, 1
    %v354 = vadd.f32 %v352, %v353
    %vm357 = vcmask 1041409
    %v358 = vsel %vm357, %v354, %v317
    %v360 = vadd.f32 %v279, %v358
    %vm361 = vcmask 254976
    %362 = vst.msk [vmem:[#allocation3] sm:$0x3] %vm361, %v360
    %v363 = vld [vmem:[#allocation2] sm:$0x3]
    %vm364 = vcmask 1041408
    %v365 = vsel %vm364, %v20, 0.0
    %366 = vadd.xlane.f32.xlu0 %v365
    %v367 = vpop.xlane.xlu0 %366
    %v368 = vadd.f32 %v363, %v367
    %vm369 = vcmask 1024
    %370 = vst.msk [vmem:[#allocation2] sm:$0x3] %vm369, %v368
    // Predicated region
    $region14: #{tpu_custom_call.1} parent=1 // pred_check
      %p371 = pneg %p12
    $region15: #{tpu_custom_call.1} parent=1 // pred_check_branch
      %373 = sbr.rel (%p371) target = $region17
    $region16: #{tpu_custom_call.1} parent=1 // pred_region
      %v374 = vld [vmem:[#allocation2] sm:$0x3]
      %v375 = vmax.f32 %v374, 1e-09
      %v376 = vrcp.pop %v375
      %v377 = vmul.f32 %v375, %v376
      %v378 = vsub.f32 1.0, %v377
      %v379 = vmul.f32 %v376, %v378
      %v380 = vadd.f32 %v376, %v379
      %vm381 = vweird.f32 %v375
      %vm382 = vweird.f32 %v376
      %vm383 = vmor %vm381, %vm382
      %v384 = vsel %vm383, %v376, %v380
      %v385 = vand.u32 2147483647, %v375
      %vm386 = vcmp.eq.f32.partialorder %v385, 8.507059e+37
      %v387 = vand.u32 %v375, 2147483648
      %v388 = vor.u32 1.1754944e-38, %v387
      %v389 = vsel %vm386, %v388, %v384
      %v390 = vld [vmem:[#allocation3] sm:$0x3]
      %392 = vset.pattern.permute.xlu0 0
      %393 = vperm.xlu0 %392, %v389
      %v394 = vpop.permute.xlu0 %393
      %v396 = vmul.f32 %v390, %v394
      %397 = vst.msk [vmem:[#allocation3] sm:$0x3] %vm361, %v396
    $region17: #{tpu_custom_call.1} parent=1 // pred_fallthru
      _
    // Predicated region
    $region18: #{tpu_custom_call.1} parent=1 // pred_check
      _
    $region19: #{tpu_custom_call.1} parent=1 // pred_check_branch
      %399 = sbr.rel (0) target = $region21
    $region20: #{tpu_custom_call.1} parent=1 // pred_region
      %401 = vsyncadd [#allocation4], 0
      %s403 = sshll.u32 [#allocation3], 4
      %s404 = int_to_ptr.vmem [resolvable:$true] %s403
      %s405 = sshll.u32 %s2, 4
      %s406 = int_to_ptr.hbm [resolvable:$true] %s405
      %408 = dma.vmem_to_hbm [thread:$0]  %s404, 32, %s406, [#allocation4]
    $region21: #{tpu_custom_call.1} parent=1 // pred_fallthru
      _
    // Predicated region
    $region22: #{tpu_custom_call.1} parent=1 // pred_check
      _
    $region23: #{tpu_custom_call.1} parent=1 // pred_check_branch
      %410 = sbr.rel (0) target = $region25
    $region24: #{tpu_custom_call.1} parent=1 // pred_region
      %412 = dma.done [#allocation4], 32
    $region25: #{tpu_custom_call.1} parent=1 // pred_fallthru
      _
    %413 = vsyncpa [#allocation4], 1

</llo_original>
